<compile_context>
chip_gen: v7x
topology: tpu7x:2x2x1
jax: 0.10.0
libtpu: 0.0.40
codegen_flags: <defaults>
</compile_context>

<pallas_src>
import functools

import jax
import jax.numpy as jnp
import numpy as np
from jax.experimental import pallas as pl
from jax.experimental.pallas import tpu as pltpu

BN_EPS = 1e-5
_VMEM_LIMIT = 32 * 1024 * 1024  # explicit, portable across v5e/v6e/v7x


def _round_up(x, m):
    return ((x + m - 1) // m) * m


def _choose_tile_p(p_real, c_max):
    """Tile of the point axis: multiple of 128, sized so double-buffered f32
    input+output tiles (plus resident weights) fit comfortably in v7x VMEM."""
    budget = 8 * 1024 * 1024
    per_col = 4 * 2 * 2 * c_max          # f32 * (in + out) * double-buffer
    tile = budget // max(per_col, 1)
    tile = max(128, min(2048, (tile // 128) * 128))
    return min(tile, _round_up(p_real, 128))


# --------------------------------------------------------------------------- kernels


def _stats_kernel(x_ref, w_ref, s1_ref, s2_ref):
    """Per-tile sum and sum-of-squares of h = W @ x (pre-BN conv output)."""
    h = jnp.dot(w_ref[...], x_ref[...], preferred_element_type=jnp.float32)
    s1_ref[...] = jnp.sum(h, axis=1, keepdims=True)
    s2_ref[...] = jnp.sum(h * h, axis=1, keepdims=True)


def _make_apply_kernel(tile_p, p_real, p_pad, next_stats):
    """Apply one layer (matmul + folded-BN FMA + ReLU) on a (C, TILE_P) tile and,
    if next_stats, also emit per-tile stats of the next layer's pre-BN activation."""

    def kernel(*refs):
        if next_stats:
            x_ref, w_ref, scale_ref, shift_ref, wn_ref, y_ref, s1_ref, s2_ref = refs
        else:
            x_ref, w_ref, scale_ref, shift_ref, y_ref = refs

        # Conv1d(kernel_size=1, bias=False): (C_out, C_in) @ (C_in, TILE_P) on the MXU.
        h = jnp.dot(w_ref[...], x_ref[...], preferred_element_type=jnp.float32)
        # Folded BatchNorm + ReLU: one FMA + one max per element.
        y = jnp.maximum(h * scale_ref[...] + shift_ref[...], 0.0)

        if p_real != p_pad:
            # Zero the padded point columns so downstream statistics stay exact.
            col = (jax.lax.broadcasted_iota(jnp.int32, y.shape, 1)
                   + pl.program_id(0) * tile_p)
            y = jnp.where(col < p_real, y, 0.0)

        y_ref[...] = y  # lane-dense store, TILE_P is a multiple of 128

        if next_stats:
            # Next layer's pre-BN activation over this tile (MXU is otherwise idle);
            # zero-padded columns contribute nothing.
            hn = jnp.dot(wn_ref[...], y, preferred_element_type=jnp.float32)
            s1_ref[...] = jnp.sum(hn, axis=1, keepdims=True)
            s2_ref[...] = jnp.sum(hn * hn, axis=1, keepdims=True)

    return kernel


# --------------------------------------------------------------------- pallas wrappers


def _input_stats_pallas(x_flat, w1, tile_p):
    c_in, p_pad = x_flat.shape
    n_tiles = p_pad // tile_p
    c_out = w1.shape[0]
    s1p, s2p = pl.pallas_call(
        _stats_kernel,
        grid=(n_tiles,),
        in_specs=[
            pl.BlockSpec((c_in, tile_p), lambda i: (0, i)),
            pl.BlockSpec((c_out, c_in), lambda i: (0, 0)),
        ],
        out_specs=(
            pl.BlockSpec((None, c_out, 1), lambda i: (i, 0, 0)),
            pl.BlockSpec((None, c_out, 1), lambda i: (i, 0, 0)),
        ),
        out_shape=(
            jax.ShapeDtypeStruct((n_tiles, c_out, 1), jnp.float32),
            jax.ShapeDtypeStruct((n_tiles, c_out, 1), jnp.float32),
        ),
        compiler_params=pltpu.CompilerParams(
            dimension_semantics=("parallel",),
            vmem_limit_bytes=_VMEM_LIMIT,
        ),
        cost_estimate=pl.CostEstimate(
            flops=int(2 * c_in * c_out * p_pad + 3 * c_out * p_pad),
            transcendentals=0,
            bytes_accessed=int(4 * (c_in * p_pad + c_in * c_out + 2 * n_tiles * c_out)),
        ),
    )(x_flat, w1)
    return s1p.sum(axis=0), s2p.sum(axis=0)  # (c_out, 1) each


def _apply_layer_pallas(x_flat, w, scale, shift, w_next, tile_p, p_real):
    c_in, p_pad = x_flat.shape
    n_tiles = p_pad // tile_p
    c_out = w.shape[0]
    next_stats = w_next is not None

    kernel = _make_apply_kernel(tile_p, p_real, p_pad, next_stats)

    in_specs = [
        pl.BlockSpec((c_in, tile_p), lambda i: (0, i)),
        pl.BlockSpec((c_out, c_in), lambda i: (0, 0)),
        pl.BlockSpec((c_out, 1), lambda i: (0, 0)),
        pl.BlockSpec((c_out, 1), lambda i: (0, 0)),
    ]
    args = [x_flat, w, scale, shift]
    out_specs = [pl.BlockSpec((c_out, tile_p), lambda i: (0, i))]
    out_shape = [jax.ShapeDtypeStruct((c_out, p_pad), jnp.float32)]
    flops = 2 * c_in * c_out * p_pad + 3 * c_out * p_pad
    bytes_accessed = 4 * ((c_in + c_out) * p_pad + c_in * c_out + 2 * c_out)

    if next_stats:
        c_next = w_next.shape[0]
        in_specs.append(pl.BlockSpec((c_next, c_out), lambda i: (0, 0)))
        args.append(w_next)
        out_specs += [
            pl.BlockSpec((None, c_next, 1), lambda i: (i, 0, 0)),
            pl.BlockSpec((None, c_next, 1), lambda i: (i, 0, 0)),
        ]
        out_shape += [jax.ShapeDtypeStruct((n_tiles, c_next, 1), jnp.float32)] * 2
        flops += 2 * c_out * c_next * p_pad + 3 * c_next * p_pad
        bytes_accessed += 4 * (c_out * c_next + 2 * n_tiles * c_next)

    outs = pl.pallas_call(
        kernel,
        grid=(n_tiles,),
        in_specs=in_specs,
        out_specs=tuple(out_specs),
        out_shape=tuple(out_shape),
        compiler_params=pltpu.CompilerParams(
            dimension_semantics=("parallel",),
            vmem_limit_bytes=_VMEM_LIMIT,
        ),
        cost_estimate=pl.CostEstimate(
            flops=int(flops), transcendentals=0, bytes_accessed=int(bytes_accessed)),
    )(*args)

    if next_stats:
        y, s1p, s2p = outs
        return y, s1p.sum(axis=0), s2p.sum(axis=0)
    return outs[0], None, None


def _scale_shift(gamma, beta, s1, s2, p_real):
    """Fold train-mode BatchNorm1d (biased batch stats) into per-channel scale/shift."""
    mean = s1 / p_real                                   # (C, 1)
    var = jnp.maximum(s2 / p_real - mean * mean, 0.0)    # biased variance
    scale = gamma.reshape(-1, 1) * jax.lax.rsqrt(var + BN_EPS)
    shift = beta.reshape(-1, 1) - mean * scale
    return scale, shift


# -------------------------------------------------------------------------- forward


@functools.partial(jax.jit, static_argnames=("channels",))
def cpointnet_forward(x_ncw, params, channels):
    """x_ncw: (B, C_in, N) float32; params: flat tuple (W_0, gamma_0, beta_0, W_1, ...).

    Returns (B, sum(channels[1:]), N) float32, matching PyTorch CPointNet.forward
    (training-mode BatchNorm normalization)."""
    b, c_in, n = x_ncw.shape
    assert c_in == channels[0]
    num_layers = len(channels) - 1
    p_real = b * n

    tile_p = _choose_tile_p(p_real, max(channels))
    n_tiles = pl.cdiv(p_real, tile_p)
    p_pad = n_tiles * tile_p

    # (B, C, N) -> (C, B, N) -> (C, B*N): one coarse transpose, points on the lane axis.
    x_flat = jnp.transpose(x_ncw, (1, 0, 2)).reshape(c_in, p_real)
    if p_pad != p_real:
        x_flat = jnp.pad(x_flat, ((0, 0), (0, p_pad - p_real)))

    # Bootstrap: full-P statistics of layer 1's pre-BN activation W_1 @ x.
    s1, s2 = _input_stats_pallas(x_flat, params[0], tile_p)

    outs = []
    x_cur = x_flat
    for l in range(num_layers):
        w, gamma, beta = params[3 * l], params[3 * l + 1], params[3 * l + 2]
        scale, shift = _scale_shift(gamma, beta, s1, s2, p_real)
        w_next = params[3 * (l + 1)] if l + 1 < num_layers else None
        y, s1, s2 = _apply_layer_pallas(x_cur, w, scale, shift, w_next, tile_p, p_real)
        outs.append(y)
        x_cur = y

    out_flat = jnp.concatenate(outs, axis=0)             # (C_total, P_pad)
    if p_pad != p_real:
        out_flat = out_flat[:, :p_real]
    return jnp.transpose(out_flat.reshape(-1, b, n), (1, 0, 2))


# ------------------------------------------------------------------- params / reference


def init_params(channels, key):
    """Deterministic Conv1d weights + BatchNorm affine params (gamma, beta)."""
    params = []
    for i in range(1, len(channels)):
        c_in, c_out = channels[i - 1], channels[i]
        key, wk, gk, bk = jax.random.split(key, 4)
        # Conv1d(kernel_size=1) weight is (C_out, C_in, 1); drop the trailing 1.
        w = jax.random.normal(wk, (c_out, c_in), jnp.float32) * (1.0 / np.sqrt(c_in))
        gamma = 1.0 + 0.1 * jax.random.normal(gk, (c_out,), jnp.float32)
        beta = 0.1 * jax.random.normal(bk, (c_out,), jnp.float32)
        params += [w, gamma, beta]
    return tuple(params)


def cpointnet_reference(x_ncw, params, channels):
    """Pure-JAX reference of the PyTorch forward (train-mode BN)."""
    outs = []
    x = x_ncw
    for l in range(len(channels) - 1):
        w, gamma, beta = params[3 * l], params[3 * l + 1], params[3 * l + 2]
        h = jnp.einsum("oc,bcn->bon", w, x)                       # conv1d k=1, no bias
        mean = jnp.mean(h, axis=(0, 2), keepdims=True)            # BN batch stats
        var = jnp.mean((h - mean) ** 2, axis=(0, 2), keepdims=True)
        h = gamma.reshape(1, -1, 1) * (h - mean) * jax.lax.rsqrt(var + BN_EPS) \
            + beta.reshape(1, -1, 1)
        h = jnp.maximum(h, 0.0)                                   # ReLU
        outs.append(h)
        x = h
    return jnp.concatenate(outs, axis=1)


if __name__ == "__main__":
    channels = (4, 8, 16, 32)   # channels[0] is the input channel count
    B, N = 2, 16

    key = jax.random.PRNGKey(0)
    key, xk = jax.random.split(key)
    x = jax.random.normal(xk, (B, channels[0], N), jnp.float32)
    params = init_params(channels, key)

    out = cpointnet_forward(x, params, channels)
    out = jax.block_until_ready(out)

    ref = cpointnet_reference(x, params, channels)
    assert out.shape == (B, sum(channels[1:]), N), out.shape
    np.testing.assert_allclose(np.asarray(out), np.asarray(ref), rtol=1e-4, atol=1e-4)

    print("KERNEL_OK")
</pallas_src>

<mosaic_0001>
module attributes {stable_mosaic.version = 11 : i64} {
  func.func @_stats_kernel(%arg0: i32, %arg1: memref<4x128xf32, #tpu.memory_space<vmem>>, %arg2: memref<8x4xf32, #tpu.memory_space<vmem>>, %arg3: memref<1x8x1xf32, #tpu.memory_space<vmem>>, %arg4: memref<1x8x1xf32, #tpu.memory_space<vmem>>) attributes {dimension_semantics = [#tpu.dimension_semantics<parallel>], iteration_bounds = array<i64: 1>, scalar_prefetch = 0 : i64, scratch_operands = 0 : i64, tpu.core_type = #tpu.core_type<tc>, window_params = [{transform_indices = @transform_0, window_bounds = array<i64: 4, 128>}, {pipeline_mode = #tpu.pipeline_mode<synchronous>, transform_indices = @transform_1, window_bounds = array<i64: 8, 4>}, {transform_indices = @transform_2, window_bounds = array<i64: 1, 8, 1>}, {transform_indices = @transform_3, window_bounds = array<i64: 1, 8, 1>}]} {
    %c0 = arith.constant 0 : index
    %c0_0 = arith.constant 0 : index
    %0 = vector.load %arg2[%c0, %c0_0] : memref<8x4xf32, #tpu.memory_space<vmem>>, vector<8x4xf32>
    %c0_1 = arith.constant 0 : index
    %c0_2 = arith.constant 0 : index
    %1 = vector.load %arg1[%c0_1, %c0_2] : memref<4x128xf32, #tpu.memory_space<vmem>>, vector<4x128xf32>
    %cst = arith.constant dense<0.000000e+00> : vector<8x128xf32>
    %2 = tpu.matmul %0, %1, %cst {dimension_numbers = #tpu.dot_dimension_numbers<[1], [0], [0], [1], [0, 0, 1, 1], [], []>} : vector<8x4xf32>, vector<4x128xf32>, vector<8x128xf32> -> vector<8x128xf32>
    %cst_3 = arith.constant dense<0.000000e+00> : vector<8xf32>
    %3 = vector.multi_reduction <add>, %2, %cst_3 [1] : vector<8x128xf32> to vector<8xf32>
    %4 = vector.shape_cast %3 : vector<8xf32> to vector<8x1xf32>
    %c0_4 = arith.constant 0 : index
    %c0_5 = arith.constant 0 : index
    %c0_6 = arith.constant 0 : index
    %5 = vector.load %arg3[%c0_4, %c0_5, %c0_6] : memref<1x8x1xf32, #tpu.memory_space<vmem>>, vector<1x8x1xf32>
    %6 = vector.shape_cast %5 : vector<1x8x1xf32> to vector<8x1xf32>
    %7 = vector.shape_cast %4 : vector<8x1xf32> to vector<1x8x1xf32>
    tpu.vector_store %arg3[%c0_4, %c0_5, %c0_6], %7 {strides = array<i32>} : memref<1x8x1xf32, #tpu.memory_space<vmem>>, vector<1x8x1xf32>,
    %8 = arith.mulf %2, %2 : vector<8x128xf32>
    %cst_7 = arith.constant dense<0.000000e+00> : vector<8xf32>
    %9 = vector.multi_reduction <add>, %8, %cst_7 [1] : vector<8x128xf32> to vector<8xf32>
    %10 = vector.shape_cast %9 : vector<8xf32> to vector<8x1xf32>
    %c0_8 = arith.constant 0 : index
    %c0_9 = arith.constant 0 : index
    %c0_10 = arith.constant 0 : index
    %11 = vector.load %arg4[%c0_8, %c0_9, %c0_10] : memref<1x8x1xf32, #tpu.memory_space<vmem>>, vector<1x8x1xf32>
    %12 = vector.shape_cast %11 : vector<1x8x1xf32> to vector<8x1xf32>
    %13 = vector.shape_cast %10 : vector<8x1xf32> to vector<1x8x1xf32>
    tpu.vector_store %arg4[%c0_8, %c0_9, %c0_10], %13 {strides = array<i32>} : memref<1x8x1xf32, #tpu.memory_space<vmem>>, vector<1x8x1xf32>,
    return
  }
  func.func @transform_0(%arg0: i32) -> (i32, i32) {
    %c0_i32 = arith.constant 0 : i32
    %c0_i32_0 = arith.constant 0 : i32
    return %c0_i32, %arg0 : i32, i32
  }
  func.func @transform_1(%arg0: i32) -> (i32, i32) {
    %c0_i32 = arith.constant 0 : i32
    %c0_i32_0 = arith.constant 0 : i32
    %c0_i32_1 = arith.constant 0 : i32
    return %c0_i32, %c0_i32_0 : i32, i32
  }
  func.func @transform_2(%arg0: i32) -> (i32, i32, i32) {
    %c0_i32 = arith.constant 0 : i32
    %c0_i32_0 = arith.constant 0 : i32
    %c0_i32_1 = arith.constant 0 : i32
    return %arg0, %c0_i32, %c0_i32_0 : i32, i32, i32
  }
  func.func @transform_3(%arg0: i32) -> (i32, i32, i32) {
    %c0_i32 = arith.constant 0 : i32
    %c0_i32_0 = arith.constant 0 : i32
    %c0_i32_1 = arith.constant 0 : i32
    return %arg0, %c0_i32, %c0_i32_0 : i32, i32, i32
  }
}

module attributes {stable_mosaic.version = 11 : i64} {
  func.func @kernel(%arg0: i32, %arg1: memref<4x128xf32, #tpu.memory_space<vmem>>, %arg2: memref<8x4xf32, #tpu.memory_space<vmem>>, %arg3: memref<8x1xf32, #tpu.memory_space<vmem>>, %arg4: memref<8x1xf32, #tpu.memory_space<vmem>>, %arg5: memref<16x8xf32, #tpu.memory_space<vmem>>, %arg6: memref<8x128xf32, #tpu.memory_space<vmem>>, %arg7: memref<1x16x1xf32, #tpu.memory_space<vmem>>, %arg8: memref<1x16x1xf32, #tpu.memory_space<vmem>>) attributes {dimension_semantics = [#tpu.dimension_semantics<parallel>], iteration_bounds = array<i64: 1>, scalar_prefetch = 0 : i64, scratch_operands = 0 : i64, tpu.core_type = #tpu.core_type<tc>, window_params = [{transform_indices = @transform_0, window_bounds = array<i64: 4, 128>}, {pipeline_mode = #tpu.pipeline_mode<synchronous>, transform_indices = @transform_1, window_bounds = array<i64: 8, 4>}, {pipeline_mode = #tpu.pipeline_mode<synchronous>, transform_indices = @transform_2, window_bounds = array<i64: 8, 1>}, {pipeline_mode = #tpu.pipeline_mode<synchronous>, transform_indices = @transform_3, window_bounds = array<i64: 8, 1>}, {pipeline_mode = #tpu.pipeline_mode<synchronous>, transform_indices = @transform_4, window_bounds = array<i64: 16, 8>}, {transform_indices = @transform_5, window_bounds = array<i64: 8, 128>}, {transform_indices = @transform_6, window_bounds = array<i64: 1, 16, 1>}, {transform_indices = @transform_7, window_bounds = array<i64: 1, 16, 1>}]} {
    %c0 = arith.constant 0 : index
    %c0_0 = arith.constant 0 : index
    %0 = vector.load %arg2[%c0, %c0_0] : memref<8x4xf32, #tpu.memory_space<vmem>>, vector<8x4xf32>
    %c0_1 = arith.constant 0 : index
    %c0_2 = arith.constant 0 : index
    %1 = vector.load %arg1[%c0_1, %c0_2] : memref<4x128xf32, #tpu.memory_space<vmem>>, vector<4x128xf32>
    %cst = arith.constant dense<0.000000e+00> : vector<8x128xf32>
    %2 = tpu.matmul %0, %1, %cst {dimension_numbers = #tpu.dot_dimension_numbers<[1], [0], [0], [1], [0, 0, 1, 1], [], []>} : vector<8x4xf32>, vector<4x128xf32>, vector<8x128xf32> -> vector<8x128xf32>
    %c0_3 = arith.constant 0 : index
    %c0_4 = arith.constant 0 : index
    %3 = vector.load %arg3[%c0_3, %c0_4] : memref<8x1xf32, #tpu.memory_space<vmem>>, vector<8x1xf32>
    %4 = vector.broadcast %3 : vector<8x1xf32> to vector<8x128xf32>
    %5 = arith.mulf %2, %4 : vector<8x128xf32>
    %c0_5 = arith.constant 0 : index
    %c0_6 = arith.constant 0 : index
    %6 = vector.load %arg4[%c0_5, %c0_6] : memref<8x1xf32, #tpu.memory_space<vmem>>, vector<8x1xf32>
    %7 = vector.broadcast %6 : vector<8x1xf32> to vector<8x128xf32>
    %8 = arith.addf %5, %7 : vector<8x128xf32>
    %cst_7 = arith.constant 0.000000e+00 : f32
    %9 = vector.broadcast %cst_7 : f32 to vector<8x128xf32>
    %10 = arith.maximumf %8, %9 : vector<8x128xf32>
    %11 = tpu.iota {dimensions = array<i32: 1>} : vector<8x128xi32>
    %c128_i32 = arith.constant 128 : i32
    %12 = arith.muli %arg0, %c128_i32 : i32
    %13 = vector.broadcast %12 : i32 to vector<8x128xi32>
    %14 = arith.addi %11, %13 : vector<8x128xi32>
    %c32_i32 = arith.constant 32 : i32
    %15 = vector.broadcast %c32_i32 : i32 to vector<8x128xi32>
    %16 = arith.cmpi slt, %14, %15 : vector<8x128xi32>
    %cst_8 = arith.constant 0.000000e+00 : f32
    %17 = vector.broadcast %cst_8 : f32 to vector<8x128xf32>
    %18 = arith.select %16, %10, %17 : vector<8x128xi1>, vector<8x128xf32>
    %c0_9 = arith.constant 0 : index
    %c0_10 = arith.constant 0 : index
    %19 = vector.load %arg6[%c0_9, %c0_10] : memref<8x128xf32, #tpu.memory_space<vmem>>, vector<8x128xf32>
    tpu.vector_store %arg6[%c0_9, %c0_10], %18 {strides = array<i32>} : memref<8x128xf32, #tpu.memory_space<vmem>>, vector<8x128xf32>,
    %c0_11 = arith.constant 0 : index
    %c0_12 = arith.constant 0 : index
    %20 = vector.load %arg5[%c0_11, %c0_12] : memref<16x8xf32, #tpu.memory_space<vmem>>, vector<16x8xf32>
    %cst_13 = arith.constant dense<0.000000e+00> : vector<16x128xf32>
    %21 = tpu.matmul %20, %18, %cst_13 {dimension_numbers = #tpu.dot_dimension_numbers<[1], [0], [0], [1], [0, 0, 1, 1], [], []>} : vector<16x8xf32>, vector<8x128xf32>, vector<16x128xf32> -> vector<16x128xf32>
    %cst_14 = arith.constant dense<0.000000e+00> : vector<16xf32>
    %22 = vector.multi_reduction <add>, %21, %cst_14 [1] : vector<16x128xf32> to vector<16xf32>
    %23 = vector.shape_cast %22 : vector<16xf32> to vector<16x1xf32>
    %c0_15 = arith.constant 0 : index
    %c0_16 = arith.constant 0 : index
    %c0_17 = arith.constant 0 : index
    %24 = vector.load %arg7[%c0_15, %c0_16, %c0_17] : memref<1x16x1xf32, #tpu.memory_space<vmem>>, vector<1x16x1xf32>
    %25 = vector.shape_cast %24 : vector<1x16x1xf32> to vector<16x1xf32>
    %26 = vector.shape_cast %23 : vector<16x1xf32> to vector<1x16x1xf32>
    tpu.vector_store %arg7[%c0_15, %c0_16, %c0_17], %26 {strides = array<i32>} : memref<1x16x1xf32, #tpu.memory_space<vmem>>, vector<1x16x1xf32>,
    %27 = arith.mulf %21, %21 : vector<16x128xf32>
    %cst_18 = arith.constant dense<0.000000e+00> : vector<16xf32>
    %28 = vector.multi_reduction <add>, %27, %cst_18 [1] : vector<16x128xf32> to vector<16xf32>
    %29 = vector.shape_cast %28 : vector<16xf32> to vector<16x1xf32>
    %c0_19 = arith.constant 0 : index
    %c0_20 = arith.constant 0 : index
    %c0_21 = arith.constant 0 : index
    %30 = vector.load %arg8[%c0_19, %c0_20, %c0_21] : memref<1x16x1xf32, #tpu.memory_space<vmem>>, vector<1x16x1xf32>
    %31 = vector.shape_cast %30 : vector<1x16x1xf32> to vector<16x1xf32>
    %32 = vector.shape_cast %29 : vector<16x1xf32> to vector<1x16x1xf32>
    tpu.vector_store %arg8[%c0_19, %c0_20, %c0_21], %32 {strides = array<i32>} : memref<1x16x1xf32, #tpu.memory_space<vmem>>, vector<1x16x1xf32>,
    return
  }
  func.func @transform_0(%arg0: i32) -> (i32, i32) {
    %c0_i32 = arith.constant 0 : i32
    %c0_i32_0 = arith.constant 0 : i32
    return %c0_i32, %arg0 : i32, i32
  }
  func.func @transform_1(%arg0: i32) -> (i32, i32) {
    %c0_i32 = arith.constant 0 : i32
    %c0_i32_0 = arith.constant 0 : i32
    %c0_i32_1 = arith.constant 0 : i32
    return %c0_i32, %c0_i32_0 : i32, i32
  }
  func.func @transform_2(%arg0: i32) -> (i32, i32) {
    %c0_i32 = arith.constant 0 : i32
    %c0_i32_0 = arith.constant 0 : i32
    %c0_i32_1 = arith.constant 0 : i32
    return %c0_i32, %c0_i32_0 : i32, i32
  }
  func.func @transform_3(%arg0: i32) -> (i32, i32) {
    %c0_i32 = arith.constant 0 : i32
    %c0_i32_0 = arith.constant 0 : i32
    %c0_i32_1 = arith.constant 0 : i32
    return %c0_i32, %c0_i32_0 : i32, i32
  }
  func.func @transform_4(%arg0: i32) -> (i32, i32) {
    %c0_i32 = arith.constant 0 : i32
    %c0_i32_0 = arith.constant 0 : i32
    %c0_i32_1 = arith.constant 0 : i32
    return %c0_i32, %c0_i32_0 : i32, i32
  }
  func.func @transform_5(%arg0: i32) -> (i32, i32) {
    %c0_i32 = arith.constant 0 : i32
    %c0_i32_0 = arith.constant 0 : i32
    return %c0_i32, %arg0 : i32, i32
  }
  func.func @transform_6(%arg0: i32) -> (i32, i32, i32) {
    %c0_i32 = arith.constant 0 : i32
    %c0_i32_0 = arith.constant 0 : i32
    %c0_i32_1 = arith.constant 0 : i32
    return %arg0, %c0_i32, %c0_i32_0 : i32, i32, i32
  }
  func.func @transform_7(%arg0: i32) -> (i32, i32, i32) {
    %c0_i32 = arith.constant 0 : i32
    %c0_i32_0 = arith.constant 0 : i32
    %c0_i32_1 = arith.constant 0 : i32
    return %arg0, %c0_i32, %c0_i32_0 : i32, i32, i32
  }
}

module attributes {stable_mosaic.version = 11 : i64} {
  func.func @kernel(%arg0: i32, %arg1: memref<8x128xf32, #tpu.memory_space<vmem>>, %arg2: memref<16x8xf32, #tpu.memory_space<vmem>>, %arg3: memref<16x1xf32, #tpu.memory_space<vmem>>, %arg4: memref<16x1xf32, #tpu.memory_space<vmem>>, %arg5: memref<32x16xf32, #tpu.memory_space<vmem>>, %arg6: memref<16x128xf32, #tpu.memory_space<vmem>>, %arg7: memref<1x32x1xf32, #tpu.memory_space<vmem>>, %arg8: memref<1x32x1xf32, #tpu.memory_space<vmem>>) attributes {dimension_semantics = [#tpu.dimension_semantics<parallel>], iteration_bounds = array<i64: 1>, scalar_prefetch = 0 : i64, scratch_operands = 0 : i64, tpu.core_type = #tpu.core_type<tc>, window_params = [{transform_indices = @transform_0, window_bounds = array<i64: 8, 128>}, {pipeline_mode = #tpu.pipeline_mode<synchronous>, transform_indices = @transform_1, window_bounds = array<i64: 16, 8>}, {pipeline_mode = #tpu.pipeline_mode<synchronous>, transform_indices = @transform_2, window_bounds = array<i64: 16, 1>}, {pipeline_mode = #tpu.pipeline_mode<synchronous>, transform_indices = @transform_3, window_bounds = array<i64: 16, 1>}, {pipeline_mode = #tpu.pipeline_mode<synchronous>, transform_indices = @transform_4, window_bounds = array<i64: 32, 16>}, {transform_indices = @transform_5, window_bounds = array<i64: 16, 128>}, {transform_indices = @transform_6, window_bounds = array<i64: 1, 32, 1>}, {transform_indices = @transform_7, window_bounds = array<i64: 1, 32, 1>}]} {
    %c0 = arith.constant 0 : index
    %c0_0 = arith.constant 0 : index
    %0 = vector.load %arg2[%c0, %c0_0] : memref<16x8xf32, #tpu.memory_space<vmem>>, vector<16x8xf32>
    %c0_1 = arith.constant 0 : index
    %c0_2 = arith.constant 0 : index
    %1 = vector.load %arg1[%c0_1, %c0_2] : memref<8x128xf32, #tpu.memory_space<vmem>>, vector<8x128xf32>
    %cst = arith.constant dense<0.000000e+00> : vector<16x128xf32>
    %2 = tpu.matmul %0, %1, %cst {dimension_numbers = #tpu.dot_dimension_numbers<[1], [0], [0], [1], [0, 0, 1, 1], [], []>} : vector<16x8xf32>, vector<8x128xf32>, vector<16x128xf32> -> vector<16x128xf32>
    %c0_3 = arith.constant 0 : index
    %c0_4 = arith.constant 0 : index
    %3 = vector.load %arg3[%c0_3, %c0_4] : memref<16x1xf32, #tpu.memory_space<vmem>>, vector<16x1xf32>
    %4 = vector.broadcast %3 : vector<16x1xf32> to vector<16x128xf32>
    %5 = arith.mulf %2, %4 : vector<16x128xf32>
    %c0_5 = arith.constant 0 : index
    %c0_6 = arith.constant 0 : index
    %6 = vector.load %arg4[%c0_5, %c0_6] : memref<16x1xf32, #tpu.memory_space<vmem>>, vector<16x1xf32>
    %7 = vector.broadcast %6 : vector<16x1xf32> to vector<16x128xf32>
    %8 = arith.addf %5, %7 : vector<16x128xf32>
    %cst_7 = arith.constant 0.000000e+00 : f32
    %9 = vector.broadcast %cst_7 : f32 to vector<16x128xf32>
    %10 = arith.maximumf %8, %9 : vector<16x128xf32>
    %11 = tpu.iota {dimensions = array<i32: 1>} : vector<16x128xi32>
    %c128_i32 = arith.constant 128 : i32
    %12 = arith.muli %arg0, %c128_i32 : i32
    %13 = vector.broadcast %12 : i32 to vector<16x128xi32>
    %14 = arith.addi %11, %13 : vector<16x128xi32>
    %c32_i32 = arith.constant 32 : i32
    %15 = vector.broadcast %c32_i32 : i32 to vector<16x128xi32>
    %16 = arith.cmpi slt, %14, %15 : vector<16x128xi32>
    %cst_8 = arith.constant 0.000000e+00 : f32
    %17 = vector.broadcast %cst_8 : f32 to vector<16x128xf32>
    %18 = arith.select %16, %10, %17 : vector<16x128xi1>, vector<16x128xf32>
    %c0_9 = arith.constant 0 : index
    %c0_10 = arith.constant 0 : index
    %19 = vector.load %arg6[%c0_9, %c0_10] : memref<16x128xf32, #tpu.memory_space<vmem>>, vector<16x128xf32>
    tpu.vector_store %arg6[%c0_9, %c0_10], %18 {strides = array<i32>} : memref<16x128xf32, #tpu.memory_space<vmem>>, vector<16x128xf32>,
    %c0_11 = arith.constant 0 : index
    %c0_12 = arith.constant 0 : index
    %20 = vector.load %arg5[%c0_11, %c0_12] : memref<32x16xf32, #tpu.memory_space<vmem>>, vector<32x16xf32>
    %cst_13 = arith.constant dense<0.000000e+00> : vector<32x128xf32>
    %21 = tpu.matmul %20, %18, %cst_13 {dimension_numbers = #tpu.dot_dimension_numbers<[1], [0], [0], [1], [0, 0, 1, 1], [], []>} : vector<32x16xf32>, vector<16x128xf32>, vector<32x128xf32> -> vector<32x128xf32>
    %cst_14 = arith.constant dense<0.000000e+00> : vector<32xf32>
    %22 = vector.multi_reduction <add>, %21, %cst_14 [1] : vector<32x128xf32> to vector<32xf32>
    %23 = vector.shape_cast %22 : vector<32xf32> to vector<32x1xf32>
    %c0_15 = arith.constant 0 : index
    %c0_16 = arith.constant 0 : index
    %c0_17 = arith.constant 0 : index
    %24 = vector.load %arg7[%c0_15, %c0_16, %c0_17] : memref<1x32x1xf32, #tpu.memory_space<vmem>>, vector<1x32x1xf32>
    %25 = vector.shape_cast %24 : vector<1x32x1xf32> to vector<32x1xf32>
    %26 = vector.shape_cast %23 : vector<32x1xf32> to vector<1x32x1xf32>
    tpu.vector_store %arg7[%c0_15, %c0_16, %c0_17], %26 {strides = array<i32>} : memref<1x32x1xf32, #tpu.memory_space<vmem>>, vector<1x32x1xf32>,
    %27 = arith.mulf %21, %21 : vector<32x128xf32>
    %cst_18 = arith.constant dense<0.000000e+00> : vector<32xf32>
    %28 = vector.multi_reduction <add>, %27, %cst_18 [1] : vector<32x128xf32> to vector<32xf32>
    %29 = vector.shape_cast %28 : vector<32xf32> to vector<32x1xf32>
    %c0_19 = arith.constant 0 : index
    %c0_20 = arith.constant 0 : index
    %c0_21 = arith.constant 0 : index
    %30 = vector.load %arg8[%c0_19, %c0_20, %c0_21] : memref<1x32x1xf32, #tpu.memory_space<vmem>>, vector<1x32x1xf32>
    %31 = vector.shape_cast %30 : vector<1x32x1xf32> to vector<32x1xf32>
    %32 = vector.shape_cast %29 : vector<32x1xf32> to vector<1x32x1xf32>
    tpu.vector_store %arg8[%c0_19, %c0_20, %c0_21], %32 {strides = array<i32>} : memref<1x32x1xf32, #tpu.memory_space<vmem>>, vector<1x32x1xf32>,
    return
  }
  func.func @transform_0(%arg0: i32) -> (i32, i32) {
    %c0_i32 = arith.constant 0 : i32
    %c0_i32_0 = arith.constant 0 : i32
    return %c0_i32, %arg0 : i32, i32
  }
  func.func @transform_1(%arg0: i32) -> (i32, i32) {
    %c0_i32 = arith.constant 0 : i32
    %c0_i32_0 = arith.constant 0 : i32
    %c0_i32_1 = arith.constant 0 : i32
    return %c0_i32, %c0_i32_0 : i32, i32
  }
  func.func @transform_2(%arg0: i32) -> (i32, i32) {
    %c0_i32 = arith.constant 0 : i32
    %c0_i32_0 = arith.constant 0 : i32
    %c0_i32_1 = arith.constant 0 : i32
    return %c0_i32, %c0_i32_0 : i32, i32
  }
  func.func @transform_3(%arg0: i32) -> (i32, i32) {
    %c0_i32 = arith.constant 0 : i32
    %c0_i32_0 = arith.constant 0 : i32
    %c0_i32_1 = arith.constant 0 : i32
    return %c0_i32, %c0_i32_0 : i32, i32
  }
  func.func @transform_4(%arg0: i32) -> (i32, i32) {
    %c0_i32 = arith.constant 0 : i32
    %c0_i32_0 = arith.constant 0 : i32
    %c0_i32_1 = arith.constant 0 : i32
    return %c0_i32, %c0_i32_0 : i32, i32
  }
  func.func @transform_5(%arg0: i32) -> (i32, i32) {
    %c0_i32 = arith.constant 0 : i32
    %c0_i32_0 = arith.constant 0 : i32
    return %c0_i32, %arg0 : i32, i32
  }
  func.func @transform_6(%arg0: i32) -> (i32, i32, i32) {
    %c0_i32 = arith.constant 0 : i32
    %c0_i32_0 = arith.constant 0 : i32
    %c0_i32_1 = arith.constant 0 : i32
    return %arg0, %c0_i32, %c0_i32_0 : i32, i32, i32
  }
  func.func @transform_7(%arg0: i32) -> (i32, i32, i32) {
    %c0_i32 = arith.constant 0 : i32
    %c0_i32_0 = arith.constant 0 : i32
    %c0_i32_1 = arith.constant 0 : i32
    return %arg0, %c0_i32, %c0_i32_0 : i32, i32, i32
  }
}

module attributes {stable_mosaic.version = 11 : i64} {
  func.func @kernel(%arg0: i32, %arg1: memref<16x128xf32, #tpu.memory_space<vmem>>, %arg2: memref<32x16xf32, #tpu.memory_space<vmem>>, %arg3: memref<32x1xf32, #tpu.memory_space<vmem>>, %arg4: memref<32x1xf32, #tpu.memory_space<vmem>>, %arg5: memref<32x128xf32, #tpu.memory_space<vmem>>) attributes {dimension_semantics = [#tpu.dimension_semantics<parallel>], iteration_bounds = array<i64: 1>, scalar_prefetch = 0 : i64, scratch_operands = 0 : i64, tpu.core_type = #tpu.core_type<tc>, window_params = [{transform_indices = @transform_0, window_bounds = array<i64: 16, 128>}, {pipeline_mode = #tpu.pipeline_mode<synchronous>, transform_indices = @transform_1, window_bounds = array<i64: 32, 16>}, {pipeline_mode = #tpu.pipeline_mode<synchronous>, transform_indices = @transform_2, window_bounds = array<i64: 32, 1>}, {pipeline_mode = #tpu.pipeline_mode<synchronous>, transform_indices = @transform_3, window_bounds = array<i64: 32, 1>}, {transform_indices = @transform_4, window_bounds = array<i64: 32, 128>}]} {
    %c0 = arith.constant 0 : index
    %c0_0 = arith.constant 0 : index
    %0 = vector.load %arg2[%c0, %c0_0] : memref<32x16xf32, #tpu.memory_space<vmem>>, vector<32x16xf32>
    %c0_1 = arith.constant 0 : index
    %c0_2 = arith.constant 0 : index
    %1 = vector.load %arg1[%c0_1, %c0_2] : memref<16x128xf32, #tpu.memory_space<vmem>>, vector<16x128xf32>
    %cst = arith.constant dense<0.000000e+00> : vector<32x128xf32>
    %2 = tpu.matmul %0, %1, %cst {dimension_numbers = #tpu.dot_dimension_numbers<[1], [0], [0], [1], [0, 0, 1, 1], [], []>} : vector<32x16xf32>, vector<16x128xf32>, vector<32x128xf32> -> vector<32x128xf32>
    %c0_3 = arith.constant 0 : index
    %c0_4 = arith.constant 0 : index
    %3 = vector.load %arg3[%c0_3, %c0_4] : memref<32x1xf32, #tpu.memory_space<vmem>>, vector<32x1xf32>
    %4 = vector.broadcast %3 : vector<32x1xf32> to vector<32x128xf32>
    %5 = arith.mulf %2, %4 : vector<32x128xf32>
    %c0_5 = arith.constant 0 : index
    %c0_6 = arith.constant 0 : index
    %6 = vector.load %arg4[%c0_5, %c0_6] : memref<32x1xf32, #tpu.memory_space<vmem>>, vector<32x1xf32>
    %7 = vector.broadcast %6 : vector<32x1xf32> to vector<32x128xf32>
    %8 = arith.addf %5, %7 : vector<32x128xf32>
    %cst_7 = arith.constant 0.000000e+00 : f32
    %9 = vector.broadcast %cst_7 : f32 to vector<32x128xf32>
    %10 = arith.maximumf %8, %9 : vector<32x128xf32>
    %11 = tpu.iota {dimensions = array<i32: 1>} : vector<32x128xi32>
    %c128_i32 = arith.constant 128 : i32
    %12 = arith.muli %arg0, %c128_i32 : i32
    %13 = vector.broadcast %12 : i32 to vector<32x128xi32>
    %14 = arith.addi %11, %13 : vector<32x128xi32>
    %c32_i32 = arith.constant 32 : i32
    %15 = vector.broadcast %c32_i32 : i32 to vector<32x128xi32>
    %16 = arith.cmpi slt, %14, %15 : vector<32x128xi32>
    %cst_8 = arith.constant 0.000000e+00 : f32
    %17 = vector.broadcast %cst_8 : f32 to vector<32x128xf32>
    %18 = arith.select %16, %10, %17 : vector<32x128xi1>, vector<32x128xf32>
    %c0_9 = arith.constant 0 : index
    %c0_10 = arith.constant 0 : index
    %19 = vector.load %arg5[%c0_9, %c0_10] : memref<32x128xf32, #tpu.memory_space<vmem>>, vector<32x128xf32>
    tpu.vector_store %arg5[%c0_9, %c0_10], %18 {strides = array<i32>} : memref<32x128xf32, #tpu.memory_space<vmem>>, vector<32x128xf32>,
    return
  }
  func.func @transform_0(%arg0: i32) -> (i32, i32) {
    %c0_i32 = arith.constant 0 : i32
    %c0_i32_0 = arith.constant 0 : i32
    return %c0_i32, %arg0 : i32, i32
  }
  func.func @transform_1(%arg0: i32) -> (i32, i32) {
    %c0_i32 = arith.constant 0 : i32
    %c0_i32_0 = arith.constant 0 : i32
    %c0_i32_1 = arith.constant 0 : i32
    return %c0_i32, %c0_i32_0 : i32, i32
  }
  func.func @transform_2(%arg0: i32) -> (i32, i32) {
    %c0_i32 = arith.constant 0 : i32
    %c0_i32_0 = arith.constant 0 : i32
    %c0_i32_1 = arith.constant 0 : i32
    return %c0_i32, %c0_i32_0 : i32, i32
  }
  func.func @transform_3(%arg0: i32) -> (i32, i32) {
    %c0_i32 = arith.constant 0 : i32
    %c0_i32_0 = arith.constant 0 : i32
    %c0_i32_1 = arith.constant 0 : i32
    return %c0_i32, %c0_i32_0 : i32, i32
  }
  func.func @transform_4(%arg0: i32) -> (i32, i32) {
    %c0_i32 = arith.constant 0 : i32
    %c0_i32_0 = arith.constant 0 : i32
    return %c0_i32, %arg0 : i32, i32
  }
}

</mosaic_0001>

<llo_original>
// kernel: cpointnet_forward.5
$region0: #{cpointnet_forward.5}
  #allocation0 [shape = 'u32[]', space=smem, size = 0x4, offset = 0x4, fixed_abs, tag = 'smem constant byte address 0x4 - core index']
  #allocation1 [shape = 'u32[144,128]{1,0:T(1,128)}', space=vmem, size = 0x12000, scoped, tag = 'internal scratch']
  %s0 = inlined_call_operand.vmem [shape: f32[4,128], index: 0, kind: input, shape index: {}]
  %s1 = inlined_call_operand.vmem [shape: f32[8,4], index: 1, kind: input, shape index: {}]
  %s2 = inlined_call_operand.vmem [shape: f32[8,1], index: 2, kind: input, shape index: {}]
  %s3 = inlined_call_operand.vmem [shape: f32[8,1], index: 3, kind: input, shape index: {}]
  %s4 = inlined_call_operand.vmem [shape: f32[16,8], index: 4, kind: input, shape index: {}]
  %s5 = inlined_call_operand.vmem [shape: f32[8,128], index: 5, kind: output, shape index: {0}]
  %s6 = inlined_call_operand.vmem [shape: f32[1,16,1], index: 6, kind: output, shape index: {1}]
  %s7 = inlined_call_operand.vmem [shape: f32[1,16,1], index: 7, kind: output, shape index: {2}]
  %8 = xla_tuple %s5, %s6, %s7
  %s9 = sld [smem:[#allocation0]]
  $region46: #{cpointnet_forward.5} parent=0
    _
  %s11 = ssub.s32 1, %s9
  %s12 = scalar_select 0, %s11, %s9
  // Predicated region
  $region2: #{cpointnet_forward.5} parent=0 // pred_check
    _
  $region3: #{cpointnet_forward.5} parent=0 // pred_check_branch
    %14 = sbr.rel (0) target = $region5
  $region4: #{cpointnet_forward.5} parent=0 // pred_region
    _
  $region5: #{cpointnet_forward.5} parent=0 // pred_fallthru
    _
  // Predicated region
  $region6: #{cpointnet_forward.5} parent=0 // pred_check
    _
  $region7: #{cpointnet_forward.5} parent=0 // pred_check_branch
    %16 = sbr.rel (0) target = $region9
  $region8: #{cpointnet_forward.5} parent=0 // pred_region
    _
  $region9: #{cpointnet_forward.5} parent=0 // pred_fallthru
    _
  // Predicated region
  $region10: #{cpointnet_forward.5} parent=0 // pred_check
    _
  $region11: #{cpointnet_forward.5} parent=0 // pred_check_branch
    %18 = sbr.rel (0) target = $region13
  $region12: #{cpointnet_forward.5} parent=0 // pred_region
    _
  $region13: #{cpointnet_forward.5} parent=0 // pred_fallthru
    _
  // Predicated region
  $region14: #{cpointnet_forward.5} parent=0 // pred_check
    _
  $region15: #{cpointnet_forward.5} parent=0 // pred_check_branch
    %20 = sbr.rel (0) target = $region17
  $region16: #{cpointnet_forward.5} parent=0 // pred_region
    _
  $region17: #{cpointnet_forward.5} parent=0 // pred_fallthru
    _
  // Predicated region
  $region18: #{cpointnet_forward.5} parent=0 // pred_check
    _
  $region19: #{cpointnet_forward.5} parent=0 // pred_check_branch
    %22 = sbr.rel (0) target = $region21
  $region20: #{cpointnet_forward.5} parent=0 // pred_region
    _
  $region21: #{cpointnet_forward.5} parent=0 // pred_fallthru
    _
  %v23 = vld [vmem:[%s1] sm:$0xff]
  %v24 = vld [vmem:[%s0] sm:$0xf]
  %vm25 = vcmask 31744
  %v27 = vsel %vm25, %v23, 0
  %vm29 = vcmask 1043456
  %v31 = vsel %vm29, %v24, 0
  %33 = vmatprep.subr.mxu0 0.0
  %34 = vmatpush1.msra.mxu0 %v31
  %35 = vmatprep.subr.mxu0 0.0
  %36 = vmatpush1.msra.mxu0 0.0
  %37 = vmatprep.subr.mxu0 0.0
  %38 = vmatpush1.msra.mxu0 0.0
  %39 = vmatprep.subr.mxu0 0.0
  %40 = vmatpush1.msra.mxu0 0.0
  %41 = vmatprep.subr.mxu0 0.0
  %42 = vmatpush1.msra.mxu0 0.0
  %43 = vmatprep.subr.mxu0 0.0
  %44 = vmatpush1.msra.mxu0 0.0
  %45 = vmatprep.subr.mxu0 0.0
  %46 = vmatpush1.msra.mxu0 0.0
  %47 = vmatprep.subr.mxu0 0.0
  %48 = vmatpush1.msra.mxu0 0.0
  %49 = vmatprep.subr.mxu0 0.0
  %50 = vmatpush1.msra.mxu0 0.0
  %51 = vmatprep.subr.mxu0 0.0
  %52 = vmatpush1.msra.mxu0 0.0
  %53 = vmatprep.subr.mxu0 0.0
  %54 = vmatpush1.msra.mxu0 0.0
  %55 = vmatprep.subr.mxu0 0.0
  %56 = vmatpush1.msra.mxu0 0.0
  %57 = vmatprep.subr.mxu0 0.0
  %58 = vmatpush1.msra.mxu0 0.0
  %59 = vmatprep.subr.mxu0 0.0
  %60 = vmatpush1.msra.mxu0 0.0
  %61 = vmatprep.subr.mxu0 0.0
  %62 = vmatpush1.msra.mxu0 0.0
  %63 = vmatprep.subr.mxu0 0.0
  %64 = vmatpush1.msra.mxu0 0.0
  %65 = vmatprep.subr.mxu0 0.0
  %66 = vmatpush1.msra.mxu0 0.0
  %67 = vmatprep.subr.mxu0 0.0
  %68 = vmatpush1.msra.mxu0 0.0
  %69 = vmatprep.subr.mxu0 0.0
  %70 = vmatpush1.msra.mxu0 0.0
  %71 = vmatprep.subr.mxu0 0.0
  %72 = vmatpush1.msra.mxu0 0.0
  %73 = vmatprep.subr.mxu0 0.0
  %74 = vmatpush1.msra.mxu0 0.0
  %75 = vmatprep.subr.mxu0 0.0
  %76 = vmatpush1.msra.mxu0 0.0
  %77 = vmatprep.subr.mxu0 0.0
  %78 = vmatpush1.msra.mxu0 0.0
  %79 = vmatprep.subr.mxu0 0.0
  %80 = vmatpush1.msra.mxu0 0.0
  %81 = vmatprep.subr.mxu0 0.0
  %82 = vmatpush1.msra.mxu0 0.0
  %83 = vmatprep.subr.mxu0 0.0
  %84 = vmatpush1.msra.mxu0 0.0
  %85 = vmatprep.subr.mxu0 0.0
  %86 = vmatpush1.msra.mxu0 0.0
  %87 = vmatprep.subr.mxu0 0.0
  %88 = vmatpush1.msra.mxu0 0.0
  %89 = vmatprep.subr.mxu0 0.0
  %90 = vmatpush1.msra.mxu0 0.0
  %91 = vmatprep.subr.mxu0 0.0
  %92 = vmatpush1.msra.mxu0 0.0
  %93 = vmatprep.subr.mxu0 0.0
  %94 = vmatpush1.msra.mxu0 0.0
  %95 = vmatprep.subr.mxu0 0.0
  %96 = vmatpush1.msra.mxu0 0.0
  %97 = vmatprep.mubr.f32.mxu0 0.0
  %98 = vmatmul.mubr.f32.gmra.mrb[0].mxu0 %v27
  %v99 = vpop.f32.mrb[0].mxu0
  %v100 = vadd.f32 0.0, %v99
  %v101 = vpop.f32.mrb[0].mxu0
  %102 = vdwg.mxu0
  %v103 = vld [vmem:[%s2] sm:$0xff]
  %105 = vset.pattern.permute.xlu0 0
  %106 = vperm.xlu0 %105, %v103
  %v107 = vpop.permute.xlu0 %106
  %v109 = vmul.f32 %v100, %v107
  %v110 = vld [vmem:[%s3] sm:$0xff]
  %112 = vset.pattern.permute.xlu0 0
  %113 = vperm.xlu0 %112, %v110
  %v114 = vpop.permute.xlu0 %113
  %v116 = vadd.f32 %v109, %v114
  %v117 = vmax.f32 %v116, 0.0
  %v118 = vlaneseq
  %v119 = vand.u32 %v118, 127
  %s120 = smul.u32 0, 128
  %v121 = vstv %s120
  %v122 = vadd.s32 %v119, %v121
  %vm123 = vcmp.lt.s32.totalorder %v122, 32
  %v124 = vsel %vm123, %v117, 0.0
  %125 = vst [vmem:[%s5] sm:$0xff] %v124
  %v126 = vld [vmem:[%s4] sm:$0xff]
  %v127 = vld [vmem:[%s4 + $0x8] sm:$0xff]
  %vm128 = vcmask 64512
  %v130 = vsel %vm128, %v126, 0
  %v133 = vsel %vm128, %v127, 0
  %135 = vmatprep.subr.mxu0 0.0
  %136 = vmatpush1.msra.mxu0 %v124
  %137 = vmatprep.subr.mxu0 0.0
  %138 = vmatpush1.msra.mxu0 0.0
  %139 = vmatprep.subr.mxu0 0.0
  %140 = vmatpush1.msra.mxu0 0.0
  %141 = vmatprep.subr.mxu0 0.0
  %142 = vmatpush1.msra.mxu0 0.0
  %143 = vmatprep.subr.mxu0 0.0
  %144 = vmatpush1.msra.mxu0 0.0
  %145 = vmatprep.subr.mxu0 0.0
  %146 = vmatpush1.msra.mxu0 0.0
  %147 = vmatprep.subr.mxu0 0.0
  %148 = vmatpush1.msra.mxu0 0.0
  %149 = vmatprep.subr.mxu0 0.0
  %150 = vmatpush1.msra.mxu0 0.0
  %151 = vmatprep.subr.mxu0 0.0
  %152 = vmatpush1.msra.mxu0 0.0
  %153 = vmatprep.subr.mxu0 0.0
  %154 = vmatpush1.msra.mxu0 0.0
  %155 = vmatprep.subr.mxu0 0.0
  %156 = vmatpush1.msra.mxu0 0.0
  %157 = vmatprep.subr.mxu0 0.0
  %158 = vmatpush1.msra.mxu0 0.0
  %159 = vmatprep.subr.mxu0 0.0
  %160 = vmatpush1.msra.mxu0 0.0
  %161 = vmatprep.subr.mxu0 0.0
  %162 = vmatpush1.msra.mxu0 0.0
  %163 = vmatprep.subr.mxu0 0.0
  %164 = vmatpush1.msra.mxu0 0.0
  %165 = vmatprep.subr.mxu0 0.0
  %166 = vmatpush1.msra.mxu0 0.0
  %167 = vmatprep.subr.mxu0 0.0
  %168 = vmatpush1.msra.mxu0 0.0
  %169 = vmatprep.subr.mxu0 0.0
  %170 = vmatpush1.msra.mxu0 0.0
  %171 = vmatprep.subr.mxu0 0.0
  %172 = vmatpush1.msra.mxu0 0.0
  %173 = vmatprep.subr.mxu0 0.0
  %174 = vmatpush1.msra.mxu0 0.0
  %175 = vmatprep.subr.mxu0 0.0
  %176 = vmatpush1.msra.mxu0 0.0
  %177 = vmatprep.subr.mxu0 0.0
  %178 = vmatpush1.msra.mxu0 0.0
  %179 = vmatprep.subr.mxu0 0.0
  %180 = vmatpush1.msra.mxu0 0.0
  %181 = vmatprep.subr.mxu0 0.0
  %182 = vmatpush1.msra.mxu0 0.0
  %183 = vmatprep.subr.mxu0 0.0
  %184 = vmatpush1.msra.mxu0 0.0
  %185 = vmatprep.subr.mxu0 0.0
  %186 = vmatpush1.msra.mxu0 0.0
  %187 = vmatprep.subr.mxu0 0.0
  %188 = vmatpush1.msra.mxu0 0.0
  %189 = vmatprep.subr.mxu0 0.0
  %190 = vmatpush1.msra.mxu0 0.0
  %191 = vmatprep.subr.mxu0 0.0
  %192 = vmatpush1.msra.mxu0 0.0
  %193 = vmatprep.subr.mxu0 0.0
  %194 = vmatpush1.msra.mxu0 0.0
  %195 = vmatprep.subr.mxu0 0.0
  %196 = vmatpush1.msra.mxu0 0.0
  %197 = vmatprep.subr.mxu0 0.0
  %198 = vmatpush1.msra.mxu0 0.0
  %199 = vmatprep.mubr.f32.mxu0 0.0
  %200 = vmatmul.mubr.f32.gmra.mrb[0].mxu0 %v130
  %v201 = vpop.f32.mrb[0].mxu0
  %v202 = vadd.f32 0.0, %v201
  %v203 = vpop.f32.mrb[0].mxu0
  %204 = vmatprep.mubr.f32.mxu0 0.0
  %205 = vmatmul.mubr.f32.gmra.mrb[0].mxu0 %v133
  %v206 = vpop.f32.mrb[0].mxu0
  %v207 = vadd.f32 0.0, %v206
  %v208 = vpop.f32.mrb[0].mxu0
  %209 = vdwg.mxu0
  %210 = vadd.xlane.f32.xlu0 %v202
  %v211 = vpop.xlane.xlu0 %210
  %212 = vadd.xlane.f32.xlu0 %v207
  %v213 = vpop.xlane.xlu0 %212
  %vm214 = vcmask 7168
  %215 = vst.msk [vmem:[%s6] sm:$0xff] %vm214, %v211
  %216 = vst.msk [vmem:[%s6 + $0x8] sm:$0xff] %vm214, %v213
  %v217 = vmul.f32 %v202, %v202
  %v218 = vmul.f32 %v207, %v207
  %219 = vadd.xlane.f32.xlu0 %v217
  %v220 = vpop.xlane.xlu0 %219
  %221 = vadd.xlane.f32.xlu0 %v218
  %v222 = vpop.xlane.xlu0 %221
  %223 = vst.msk [vmem:[%s7] sm:$0xff] %vm214, %v220
  %224 = vst.msk [vmem:[%s7 + $0x8] sm:$0xff] %vm214, %v222
  // Predicated region
  $region22: #{cpointnet_forward.5} parent=0 // pred_check
    _
  $region23: #{cpointnet_forward.5} parent=0 // pred_check_branch
    %226 = sbr.rel (0) target = $region25
  $region24: #{cpointnet_forward.5} parent=0 // pred_region
    _
  $region25: #{cpointnet_forward.5} parent=0 // pred_fallthru
    _
  // Predicated region
  $region26: #{cpointnet_forward.5} parent=0 // pred_check
    _
  $region27: #{cpointnet_forward.5} parent=0 // pred_check_branch
    %228 = sbr.rel (0) target = $region29
  $region28: #{cpointnet_forward.5} parent=0 // pred_region
    _
  $region29: #{cpointnet_forward.5} parent=0 // pred_fallthru
    _
  // Predicated region
  $region30: #{cpointnet_forward.5} parent=0 // pred_check
    _
  $region31: #{cpointnet_forward.5} parent=0 // pred_check_branch
    %230 = sbr.rel (0) target = $region33
  $region32: #{cpointnet_forward.5} parent=0 // pred_region
    _
  $region33: #{cpointnet_forward.5} parent=0 // pred_fallthru
    _
  // Predicated region
  $region34: #{cpointnet_forward.5} parent=0 // pred_check
    _
  $region35: #{cpointnet_forward.5} parent=0 // pred_check_branch
    %232 = sbr.rel (0) target = $region37
  $region36: #{cpointnet_forward.5} parent=0 // pred_region
    _
  $region37: #{cpointnet_forward.5} parent=0 // pred_fallthru
    _
  // Predicated region
  $region38: #{cpointnet_forward.5} parent=0 // pred_check
    _
  $region39: #{cpointnet_forward.5} parent=0 // pred_check_branch
    %234 = sbr.rel (0) target = $region41
  $region40: #{cpointnet_forward.5} parent=0 // pred_region
    _
  $region41: #{cpointnet_forward.5} parent=0 // pred_fallthru
    _
  // Predicated region
  $region42: #{cpointnet_forward.5} parent=0 // pred_check
    _
  $region43: #{cpointnet_forward.5} parent=0 // pred_check_branch
    %236 = sbr.rel (0) target = $region45
  $region44: #{cpointnet_forward.5} parent=0 // pred_region
    _
  $region45: #{cpointnet_forward.5} parent=0 // pred_fallthru
    _

// kernel: cpointnet_forward.4
$region0: #{cpointnet_forward.4}
  #allocation0 [shape = 'u32[]', space=smem, size = 0x4, offset = 0x4, fixed_abs, tag = 'smem constant byte address 0x4 - core index']
  #allocation1 [shape = 'u32[144,128]{1,0:T(1,128)}', space=vmem, size = 0x12000, scoped, tag = 'internal scratch']
  %s0 = inlined_call_operand.vmem [shape: f32[4,128], index: 0, kind: input, shape index: {}]
  %s1 = inlined_call_operand.vmem [shape: f32[8,4], index: 1, kind: input, shape index: {}]
  %s2 = inlined_call_operand.vmem [shape: f32[1,8,1], index: 2, kind: output, shape index: {0}]
  %s3 = inlined_call_operand.vmem [shape: f32[1,8,1], index: 3, kind: output, shape index: {1}]
  %4 = xla_tuple %s2, %s3
  %s5 = sld [smem:[#allocation0]]
  $region26: #{cpointnet_forward.4} parent=0
    _
  %s7 = ssub.s32 1, %s5
  %s8 = scalar_select 0, %s7, %s5
  // Predicated region
  $region2: #{cpointnet_forward.4} parent=0 // pred_check
    _
  $region3: #{cpointnet_forward.4} parent=0 // pred_check_branch
    %10 = sbr.rel (0) target = $region5
  $region4: #{cpointnet_forward.4} parent=0 // pred_region
    _
  $region5: #{cpointnet_forward.4} parent=0 // pred_fallthru
    _
  // Predicated region
  $region6: #{cpointnet_forward.4} parent=0 // pred_check
    _
  $region7: #{cpointnet_forward.4} parent=0 // pred_check_branch
    %12 = sbr.rel (0) target = $region9
  $region8: #{cpointnet_forward.4} parent=0 // pred_region
    _
  $region9: #{cpointnet_forward.4} parent=0 // pred_fallthru
    _
  %v13 = vld [vmem:[%s1] sm:$0xff]
  %v14 = vld [vmem:[%s0] sm:$0xf]
  %vm15 = vcmask 31744
  %v17 = vsel %vm15, %v13, 0
  %vm19 = vcmask 1043456
  %v21 = vsel %vm19, %v14, 0
  %23 = vmatprep.subr.mxu0 0.0
  %24 = vmatpush1.msra.mxu0 %v21
  %25 = vmatprep.subr.mxu0 0.0
  %26 = vmatpush1.msra.mxu0 0.0
  %27 = vmatprep.subr.mxu0 0.0
  %28 = vmatpush1.msra.mxu0 0.0
  %29 = vmatprep.subr.mxu0 0.0
  %30 = vmatpush1.msra.mxu0 0.0
  %31 = vmatprep.subr.mxu0 0.0
  %32 = vmatpush1.msra.mxu0 0.0
  %33 = vmatprep.subr.mxu0 0.0
  %34 = vmatpush1.msra.mxu0 0.0
  %35 = vmatprep.subr.mxu0 0.0
  %36 = vmatpush1.msra.mxu0 0.0
  %37 = vmatprep.subr.mxu0 0.0
  %38 = vmatpush1.msra.mxu0 0.0
  %39 = vmatprep.subr.mxu0 0.0
  %40 = vmatpush1.msra.mxu0 0.0
  %41 = vmatprep.subr.mxu0 0.0
  %42 = vmatpush1.msra.mxu0 0.0
  %43 = vmatprep.subr.mxu0 0.0
  %44 = vmatpush1.msra.mxu0 0.0
  %45 = vmatprep.subr.mxu0 0.0
  %46 = vmatpush1.msra.mxu0 0.0
  %47 = vmatprep.subr.mxu0 0.0
  %48 = vmatpush1.msra.mxu0 0.0
  %49 = vmatprep.subr.mxu0 0.0
  %50 = vmatpush1.msra.mxu0 0.0
  %51 = vmatprep.subr.mxu0 0.0
  %52 = vmatpush1.msra.mxu0 0.0
  %53 = vmatprep.subr.mxu0 0.0
  %54 = vmatpush1.msra.mxu0 0.0
  %55 = vmatprep.subr.mxu0 0.0
  %56 = vmatpush1.msra.mxu0 0.0
  %57 = vmatprep.subr.mxu0 0.0
  %58 = vmatpush1.msra.mxu0 0.0
  %59 = vmatprep.subr.mxu0 0.0
  %60 = vmatpush1.msra.mxu0 0.0
  %61 = vmatprep.subr.mxu0 0.0
  %62 = vmatpush1.msra.mxu0 0.0
  %63 = vmatprep.subr.mxu0 0.0
  %64 = vmatpush1.msra.mxu0 0.0
  %65 = vmatprep.subr.mxu0 0.0
  %66 = vmatpush1.msra.mxu0 0.0
  %67 = vmatprep.subr.mxu0 0.0
  %68 = vmatpush1.msra.mxu0 0.0
  %69 = vmatprep.subr.mxu0 0.0
  %70 = vmatpush1.msra.mxu0 0.0
  %71 = vmatprep.subr.mxu0 0.0
  %72 = vmatpush1.msra.mxu0 0.0
  %73 = vmatprep.subr.mxu0 0.0
  %74 = vmatpush1.msra.mxu0 0.0
  %75 = vmatprep.subr.mxu0 0.0
  %76 = vmatpush1.msra.mxu0 0.0
  %77 = vmatprep.subr.mxu0 0.0
  %78 = vmatpush1.msra.mxu0 0.0
  %79 = vmatprep.subr.mxu0 0.0
  %80 = vmatpush1.msra.mxu0 0.0
  %81 = vmatprep.subr.mxu0 0.0
  %82 = vmatpush1.msra.mxu0 0.0
  %83 = vmatprep.subr.mxu0 0.0
  %84 = vmatpush1.msra.mxu0 0.0
  %85 = vmatprep.subr.mxu0 0.0
  %86 = vmatpush1.msra.mxu0 0.0
  %87 = vmatprep.mubr.f32.mxu0 0.0
  %88 = vmatmul.mubr.f32.gmra.mrb[0].mxu0 %v17
  %v89 = vpop.f32.mrb[0].mxu0
  %v90 = vadd.f32 0.0, %v89
  %v91 = vpop.f32.mrb[0].mxu0
  %92 = vdwg.mxu0
  %93 = vadd.xlane.f32.xlu0 %v90
  %v94 = vpop.xlane.xlu0 %93
  %vm95 = vcmask 7168
  %96 = vst.msk [vmem:[%s2] sm:$0xff] %vm95, %v94
  %v97 = vmul.f32 %v90, %v90
  %98 = vadd.xlane.f32.xlu0 %v97
  %v99 = vpop.xlane.xlu0 %98
  %100 = vst.msk [vmem:[%s3] sm:$0xff] %vm95, %v99
  // Predicated region
  $region10: #{cpointnet_forward.4} parent=0 // pred_check
    _
  $region11: #{cpointnet_forward.4} parent=0 // pred_check_branch
    %102 = sbr.rel (0) target = $region13
  $region12: #{cpointnet_forward.4} parent=0 // pred_region
    _
  $region13: #{cpointnet_forward.4} parent=0 // pred_fallthru
    _
  // Predicated region
  $region14: #{cpointnet_forward.4} parent=0 // pred_check
    _
  $region15: #{cpointnet_forward.4} parent=0 // pred_check_branch
    %104 = sbr.rel (0) target = $region17
  $region16: #{cpointnet_forward.4} parent=0 // pred_region
    _
  $region17: #{cpointnet_forward.4} parent=0 // pred_fallthru
    _
  // Predicated region
  $region18: #{cpointnet_forward.4} parent=0 // pred_check
    _
  $region19: #{cpointnet_forward.4} parent=0 // pred_check_branch
    %106 = sbr.rel (0) target = $region21
  $region20: #{cpointnet_forward.4} parent=0 // pred_region
    _
  $region21: #{cpointnet_forward.4} parent=0 // pred_fallthru
    _
  // Predicated region
  $region22: #{cpointnet_forward.4} parent=0 // pred_check
    _
  $region23: #{cpointnet_forward.4} parent=0 // pred_check_branch
    %108 = sbr.rel (0) target = $region25
  $region24: #{cpointnet_forward.4} parent=0 // pred_region
    _
  $region25: #{cpointnet_forward.4} parent=0 // pred_fallthru
    _

// kernel: cpointnet_forward.6
$region0: #{cpointnet_forward.6}
  #allocation0 [shape = 'u32[]', space=smem, size = 0x4, offset = 0x4, fixed_abs, tag = 'smem constant byte address 0x4 - core index']
  #allocation1 [shape = 'u32[144,128]{1,0:T(1,128)}', space=vmem, size = 0x12000, scoped, tag = 'internal scratch']
  %s0 = inlined_call_operand.vmem [shape: f32[8,128], index: 0, kind: input, shape index: {}]
  %s1 = inlined_call_operand.vmem [shape: f32[16,8], index: 1, kind: input, shape index: {}]
  %s2 = inlined_call_operand.vmem [shape: f32[16,1], index: 2, kind: input, shape index: {}]
  %s3 = inlined_call_operand.vmem [shape: f32[16,1], index: 3, kind: input, shape index: {}]
  %s4 = inlined_call_operand.vmem [shape: f32[32,16], index: 4, kind: input, shape index: {}]
  %s5 = inlined_call_operand.vmem [shape: f32[16,128], index: 5, kind: output, shape index: {0}]
  %s6 = inlined_call_operand.vmem [shape: f32[1,32,1], index: 6, kind: output, shape index: {1}]
  %s7 = inlined_call_operand.vmem [shape: f32[1,32,1], index: 7, kind: output, shape index: {2}]
  %8 = xla_tuple %s5, %s6, %s7
  %s9 = sld [smem:[#allocation0]]
  $region46: #{cpointnet_forward.6} parent=0
    _
  %s11 = ssub.s32 1, %s9
  %s12 = scalar_select 0, %s11, %s9
  // Predicated region
  $region2: #{cpointnet_forward.6} parent=0 // pred_check
    _
  $region3: #{cpointnet_forward.6} parent=0 // pred_check_branch
    %14 = sbr.rel (0) target = $region5
  $region4: #{cpointnet_forward.6} parent=0 // pred_region
    _
  $region5: #{cpointnet_forward.6} parent=0 // pred_fallthru
    _
  // Predicated region
  $region6: #{cpointnet_forward.6} parent=0 // pred_check
    _
  $region7: #{cpointnet_forward.6} parent=0 // pred_check_branch
    %16 = sbr.rel (0) target = $region9
  $region8: #{cpointnet_forward.6} parent=0 // pred_region
    _
  $region9: #{cpointnet_forward.6} parent=0 // pred_fallthru
    _
  // Predicated region
  $region10: #{cpointnet_forward.6} parent=0 // pred_check
    _
  $region11: #{cpointnet_forward.6} parent=0 // pred_check_branch
    %18 = sbr.rel (0) target = $region13
  $region12: #{cpointnet_forward.6} parent=0 // pred_region
    _
  $region13: #{cpointnet_forward.6} parent=0 // pred_fallthru
    _
  // Predicated region
  $region14: #{cpointnet_forward.6} parent=0 // pred_check
    _
  $region15: #{cpointnet_forward.6} parent=0 // pred_check_branch
    %20 = sbr.rel (0) target = $region17
  $region16: #{cpointnet_forward.6} parent=0 // pred_region
    _
  $region17: #{cpointnet_forward.6} parent=0 // pred_fallthru
    _
  // Predicated region
  $region18: #{cpointnet_forward.6} parent=0 // pred_check
    _
  $region19: #{cpointnet_forward.6} parent=0 // pred_check_branch
    %22 = sbr.rel (0) target = $region21
  $region20: #{cpointnet_forward.6} parent=0 // pred_region
    _
  $region21: #{cpointnet_forward.6} parent=0 // pred_fallthru
    _
  %v23 = vld [vmem:[%s1] sm:$0xff]
  %v24 = vld [vmem:[%s1 + $0x8] sm:$0xff]
  %v25 = vld [vmem:[%s0] sm:$0xff]
  %vm26 = vcmask 64512
  %v28 = vsel %vm26, %v23, 0
  %v31 = vsel %vm26, %v24, 0
  %33 = vmatprep.subr.mxu0 0.0
  %34 = vmatpush1.msra.mxu0 %v25
  %35 = vmatprep.subr.mxu0 0.0
  %36 = vmatpush1.msra.mxu0 0.0
  %37 = vmatprep.subr.mxu0 0.0
  %38 = vmatpush1.msra.mxu0 0.0
  %39 = vmatprep.subr.mxu0 0.0
  %40 = vmatpush1.msra.mxu0 0.0
  %41 = vmatprep.subr.mxu0 0.0
  %42 = vmatpush1.msra.mxu0 0.0
  %43 = vmatprep.subr.mxu0 0.0
  %44 = vmatpush1.msra.mxu0 0.0
  %45 = vmatprep.subr.mxu0 0.0
  %46 = vmatpush1.msra.mxu0 0.0
  %47 = vmatprep.subr.mxu0 0.0
  %48 = vmatpush1.msra.mxu0 0.0
  %49 = vmatprep.subr.mxu0 0.0
  %50 = vmatpush1.msra.mxu0 0.0
  %51 = vmatprep.subr.mxu0 0.0
  %52 = vmatpush1.msra.mxu0 0.0
  %53 = vmatprep.subr.mxu0 0.0
  %54 = vmatpush1.msra.mxu0 0.0
  %55 = vmatprep.subr.mxu0 0.0
  %56 = vmatpush1.msra.mxu0 0.0
  %57 = vmatprep.subr.mxu0 0.0
  %58 = vmatpush1.msra.mxu0 0.0
  %59 = vmatprep.subr.mxu0 0.0
  %60 = vmatpush1.msra.mxu0 0.0
  %61 = vmatprep.subr.mxu0 0.0
  %62 = vmatpush1.msra.mxu0 0.0
  %63 = vmatprep.subr.mxu0 0.0
  %64 = vmatpush1.msra.mxu0 0.0
  %65 = vmatprep.subr.mxu0 0.0
  %66 = vmatpush1.msra.mxu0 0.0
  %67 = vmatprep.subr.mxu0 0.0
  %68 = vmatpush1.msra.mxu0 0.0
  %69 = vmatprep.subr.mxu0 0.0
  %70 = vmatpush1.msra.mxu0 0.0
  %71 = vmatprep.subr.mxu0 0.0
  %72 = vmatpush1.msra.mxu0 0.0
  %73 = vmatprep.subr.mxu0 0.0
  %74 = vmatpush1.msra.mxu0 0.0
  %75 = vmatprep.subr.mxu0 0.0
  %76 = vmatpush1.msra.mxu0 0.0
  %77 = vmatprep.subr.mxu0 0.0
  %78 = vmatpush1.msra.mxu0 0.0
  %79 = vmatprep.subr.mxu0 0.0
  %80 = vmatpush1.msra.mxu0 0.0
  %81 = vmatprep.subr.mxu0 0.0
  %82 = vmatpush1.msra.mxu0 0.0
  %83 = vmatprep.subr.mxu0 0.0
  %84 = vmatpush1.msra.mxu0 0.0
  %85 = vmatprep.subr.mxu0 0.0
  %86 = vmatpush1.msra.mxu0 0.0
  %87 = vmatprep.subr.mxu0 0.0
  %88 = vmatpush1.msra.mxu0 0.0
  %89 = vmatprep.subr.mxu0 0.0
  %90 = vmatpush1.msra.mxu0 0.0
  %91 = vmatprep.subr.mxu0 0.0
  %92 = vmatpush1.msra.mxu0 0.0
  %93 = vmatprep.subr.mxu0 0.0
  %94 = vmatpush1.msra.mxu0 0.0
  %95 = vmatprep.subr.mxu0 0.0
  %96 = vmatpush1.msra.mxu0 0.0
  %97 = vmatprep.mubr.f32.mxu0 0.0
  %98 = vmatmul.mubr.f32.gmra.mrb[0].mxu0 %v28
  %v99 = vpop.f32.mrb[0].mxu0
  %v100 = vadd.f32 0.0, %v99
  %v101 = vpop.f32.mrb[0].mxu0
  %102 = vmatprep.mubr.f32.mxu0 0.0
  %103 = vmatmul.mubr.f32.gmra.mrb[0].mxu0 %v31
  %v104 = vpop.f32.mrb[0].mxu0
  %v105 = vadd.f32 0.0, %v104
  %v106 = vpop.f32.mrb[0].mxu0
  %107 = vdwg.mxu0
  %v108 = vld [vmem:[%s2] sm:$0xff]
  %v109 = vld [vmem:[%s2 + $0x8] sm:$0xff]
  %111 = vset.pattern.permute.xlu0 0
  %112 = vperm.xlu0 %111, %v108
  %v113 = vpop.permute.xlu0 %112
  %116 = vset.pattern.permute.xlu0 0
  %117 = vperm.xlu0 %116, %v109
  %v118 = vpop.permute.xlu0 %117
  %v120 = vmul.f32 %v100, %v113
  %v121 = vmul.f32 %v105, %v118
  %v122 = vld [vmem:[%s3] sm:$0xff]
  %v123 = vld [vmem:[%s3 + $0x8] sm:$0xff]
  %125 = vset.pattern.permute.xlu0 0
  %126 = vperm.xlu0 %125, %v122
  %v127 = vpop.permute.xlu0 %126
  %130 = vset.pattern.permute.xlu0 0
  %131 = vperm.xlu0 %130, %v123
  %v132 = vpop.permute.xlu0 %131
  %v134 = vadd.f32 %v120, %v127
  %v135 = vadd.f32 %v121, %v132
  %v136 = vmax.f32 %v134, 0.0
  %v137 = vmax.f32 %v135, 0.0
  %v138 = vlaneseq
  %v139 = vand.u32 %v138, 127
  %s140 = smul.u32 0, 128
  %v141 = vstv %s140
  %v142 = vadd.s32 %v139, %v141
  %vm143 = vcmp.lt.s32.totalorder %v142, 32
  %v144 = vsel %vm143, %v136, 0.0
  %v145 = vsel %vm143, %v137, 0.0
  %146 = vst [vmem:[%s5] sm:$0xff] %v144
  %147 = vst [vmem:[%s5 + $0x8] sm:$0xff] %v145
  %v148 = vld [vmem:[%s4] sm:$0xff]
  %v149 = vld [vmem:[%s4 + $0x8] sm:$0xff]
  %v150 = vld [vmem:[%s4 + $0x10] sm:$0xff]
  %v151 = vld [vmem:[%s4 + $0x18] sm:$0xff]
  %vm152 = vcmask 130048
  %v154 = vsel %vm152, %v148, 0
  %v157 = vsel %vm152, %v149, 0
  %v160 = vsel %vm152, %v150, 0
  %v163 = vsel %vm152, %v151, 0
  %165 = vmatprep.subr.mxu0 0.0
  %166 = vmatpush1.msra.mxu0 %v144
  %167 = vmatprep.subr.mxu0 0.0
  %168 = vmatpush1.msra.mxu0 %v145
  %169 = vmatprep.subr.mxu0 0.0
  %170 = vmatpush1.msra.mxu0 0.0
  %171 = vmatprep.subr.mxu0 0.0
  %172 = vmatpush1.msra.mxu0 0.0
  %173 = vmatprep.subr.mxu0 0.0
  %174 = vmatpush1.msra.mxu0 0.0
  %175 = vmatprep.subr.mxu0 0.0
  %176 = vmatpush1.msra.mxu0 0.0
  %177 = vmatprep.subr.mxu0 0.0
  %178 = vmatpush1.msra.mxu0 0.0
  %179 = vmatprep.subr.mxu0 0.0
  %180 = vmatpush1.msra.mxu0 0.0
  %181 = vmatprep.subr.mxu0 0.0
  %182 = vmatpush1.msra.mxu0 0.0
  %183 = vmatprep.subr.mxu0 0.0
  %184 = vmatpush1.msra.mxu0 0.0
  %185 = vmatprep.subr.mxu0 0.0
  %186 = vmatpush1.msra.mxu0 0.0
  %187 = vmatprep.subr.mxu0 0.0
  %188 = vmatpush1.msra.mxu0 0.0
  %189 = vmatprep.subr.mxu0 0.0
  %190 = vmatpush1.msra.mxu0 0.0
  %191 = vmatprep.subr.mxu0 0.0
  %192 = vmatpush1.msra.mxu0 0.0
  %193 = vmatprep.subr.mxu0 0.0
  %194 = vmatpush1.msra.mxu0 0.0
  %195 = vmatprep.subr.mxu0 0.0
  %196 = vmatpush1.msra.mxu0 0.0
  %197 = vmatprep.subr.mxu0 0.0
  %198 = vmatpush1.msra.mxu0 0.0
  %199 = vmatprep.subr.mxu0 0.0
  %200 = vmatpush1.msra.mxu0 0.0
  %201 = vmatprep.subr.mxu0 0.0
  %202 = vmatpush1.msra.mxu0 0.0
  %203 = vmatprep.subr.mxu0 0.0
  %204 = vmatpush1.msra.mxu0 0.0
  %205 = vmatprep.subr.mxu0 0.0
  %206 = vmatpush1.msra.mxu0 0.0
  %207 = vmatprep.subr.mxu0 0.0
  %208 = vmatpush1.msra.mxu0 0.0
  %209 = vmatprep.subr.mxu0 0.0
  %210 = vmatpush1.msra.mxu0 0.0
  %211 = vmatprep.subr.mxu0 0.0
  %212 = vmatpush1.msra.mxu0 0.0
  %213 = vmatprep.subr.mxu0 0.0
  %214 = vmatpush1.msra.mxu0 0.0
  %215 = vmatprep.subr.mxu0 0.0
  %216 = vmatpush1.msra.mxu0 0.0
  %217 = vmatprep.subr.mxu0 0.0
  %218 = vmatpush1.msra.mxu0 0.0
  %219 = vmatprep.subr.mxu0 0.0
  %220 = vmatpush1.msra.mxu0 0.0
  %221 = vmatprep.subr.mxu0 0.0
  %222 = vmatpush1.msra.mxu0 0.0
  %223 = vmatprep.subr.mxu0 0.0
  %224 = vmatpush1.msra.mxu0 0.0
  %225 = vmatprep.subr.mxu0 0.0
  %226 = vmatpush1.msra.mxu0 0.0
  %227 = vmatprep.subr.mxu0 0.0
  %228 = vmatpush1.msra.mxu0 0.0
  %229 = vmatprep.mubr.f32.mxu0 0.0
  %230 = vmatmul.mubr.f32.gmra.mrb[0].mxu0 %v154
  %v231 = vpop.f32.mrb[0].mxu0
  %v232 = vadd.f32 0.0, %v231
  %v233 = vpop.f32.mrb[0].mxu0
  %234 = vmatprep.mubr.f32.mxu0 0.0
  %235 = vmatmul.mubr.f32.gmra.mrb[0].mxu0 %v157
  %v236 = vpop.f32.mrb[0].mxu0
  %v237 = vadd.f32 0.0, %v236
  %v238 = vpop.f32.mrb[0].mxu0
  %239 = vmatprep.mubr.f32.mxu0 0.0
  %240 = vmatmul.mubr.f32.gmra.mrb[0].mxu0 %v160
  %v241 = vpop.f32.mrb[0].mxu0
  %v242 = vadd.f32 0.0, %v241
  %v243 = vpop.f32.mrb[0].mxu0
  %244 = vmatprep.mubr.f32.mxu0 0.0
  %245 = vmatmul.mubr.f32.gmra.mrb[0].mxu0 %v163
  %v246 = vpop.f32.mrb[0].mxu0
  %v247 = vadd.f32 0.0, %v246
  %v248 = vpop.f32.mrb[0].mxu0
  %249 = vdwg.mxu0
  %250 = vadd.xlane.f32.xlu0 %v232
  %v251 = vpop.xlane.xlu0 %250
  %252 = vadd.xlane.f32.xlu0 %v237
  %v253 = vpop.xlane.xlu0 %252
  %254 = vadd.xlane.f32.xlu0 %v242
  %v255 = vpop.xlane.xlu0 %254
  %256 = vadd.xlane.f32.xlu0 %v247
  %v257 = vpop.xlane.xlu0 %256
  %vm258 = vcmask 7168
  %259 = vst.msk [vmem:[%s6] sm:$0xff] %vm258, %v251
  %260 = vst.msk [vmem:[%s6 + $0x8] sm:$0xff] %vm258, %v253
  %261 = vst.msk [vmem:[%s6 + $0x10] sm:$0xff] %vm258, %v255
  %262 = vst.msk [vmem:[%s6 + $0x18] sm:$0xff] %vm258, %v257
  %v263 = vmul.f32 %v232, %v232
  %v264 = vmul.f32 %v237, %v237
  %v265 = vmul.f32 %v242, %v242
  %v266 = vmul.f32 %v247, %v247
  %267 = vadd.xlane.f32.xlu0 %v263
  %v268 = vpop.xlane.xlu0 %267
  %269 = vadd.xlane.f32.xlu0 %v264
  %v270 = vpop.xlane.xlu0 %269
  %271 = vadd.xlane.f32.xlu0 %v265
  %v272 = vpop.xlane.xlu0 %271
  %273 = vadd.xlane.f32.xlu0 %v266
  %v274 = vpop.xlane.xlu0 %273
  %275 = vst.msk [vmem:[%s7] sm:$0xff] %vm258, %v268
  %276 = vst.msk [vmem:[%s7 + $0x8] sm:$0xff] %vm258, %v270
  %277 = vst.msk [vmem:[%s7 + $0x10] sm:$0xff] %vm258, %v272
  %278 = vst.msk [vmem:[%s7 + $0x18] sm:$0xff] %vm258, %v274
  // Predicated region
  $region22: #{cpointnet_forward.6} parent=0 // pred_check
    _
  $region23: #{cpointnet_forward.6} parent=0 // pred_check_branch
    %280 = sbr.rel (0) target = $region25
  $region24: #{cpointnet_forward.6} parent=0 // pred_region
    _
  $region25: #{cpointnet_forward.6} parent=0 // pred_fallthru
    _
  // Predicated region
  $region26: #{cpointnet_forward.6} parent=0 // pred_check
    _
  $region27: #{cpointnet_forward.6} parent=0 // pred_check_branch
    %282 = sbr.rel (0) target = $region29
  $region28: #{cpointnet_forward.6} parent=0 // pred_region
    _
  $region29: #{cpointnet_forward.6} parent=0 // pred_fallthru
    _
  // Predicated region
  $region30: #{cpointnet_forward.6} parent=0 // pred_check
    _
  $region31: #{cpointnet_forward.6} parent=0 // pred_check_branch
    %284 = sbr.rel (0) target = $region33
  $region32: #{cpointnet_forward.6} parent=0 // pred_region
    _
  $region33: #{cpointnet_forward.6} parent=0 // pred_fallthru
    _
  // Predicated region
  $region34: #{cpointnet_forward.6} parent=0 // pred_check
    _
  $region35: #{cpointnet_forward.6} parent=0 // pred_check_branch
    %286 = sbr.rel (0) target = $region37
  $region36: #{cpointnet_forward.6} parent=0 // pred_region
    _
  $region37: #{cpointnet_forward.6} parent=0 // pred_fallthru
    _
  // Predicated region
  $region38: #{cpointnet_forward.6} parent=0 // pred_check
    _
  $region39: #{cpointnet_forward.6} parent=0 // pred_check_branch
    %288 = sbr.rel (0) target = $region41
  $region40: #{cpointnet_forward.6} parent=0 // pred_region
    _
  $region41: #{cpointnet_forward.6} parent=0 // pred_fallthru
    _
  // Predicated region
  $region42: #{cpointnet_forward.6} parent=0 // pred_check
    _
  $region43: #{cpointnet_forward.6} parent=0 // pred_check_branch
    %290 = sbr.rel (0) target = $region45
  $region44: #{cpointnet_forward.6} parent=0 // pred_region
    _
  $region45: #{cpointnet_forward.6} parent=0 // pred_fallthru
    _

// kernel: cpointnet_forward.7
$region0: #{cpointnet_forward.7}
  #allocation0 [shape = 'u32[]', space=smem, size = 0x4, offset = 0x4, fixed_abs, tag = 'smem constant byte address 0x4 - core index']
  #allocation1 [shape = 'u32[144,128]{1,0:T(1,128)}', space=vmem, size = 0x12000, scoped, tag = 'internal scratch']
  %s0 = inlined_call_operand.vmem [shape: f32[16,128], index: 0, kind: input, shape index: {}]
  %s1 = inlined_call_operand.vmem [shape: f32[32,16], index: 1, kind: input, shape index: {}]
  %s2 = inlined_call_operand.vmem [shape: f32[32,1], index: 2, kind: input, shape index: {}]
  %s3 = inlined_call_operand.vmem [shape: f32[32,1], index: 3, kind: input, shape index: {}]
  %s4 = inlined_call_operand.vmem [shape: f32[32,128], index: 4, kind: output, shape index: {}]
  %s5 = sld [smem:[#allocation0]]
  $region26: #{cpointnet_forward.7} parent=0
    _
  %s7 = ssub.s32 1, %s5
  %s8 = scalar_select 0, %s7, %s5
  // Predicated region
  $region2: #{cpointnet_forward.7} parent=0 // pred_check
    _
  $region3: #{cpointnet_forward.7} parent=0 // pred_check_branch
    %10 = sbr.rel (0) target = $region5
  $region4: #{cpointnet_forward.7} parent=0 // pred_region
    _
  $region5: #{cpointnet_forward.7} parent=0 // pred_fallthru
    _
  // Predicated region
  $region6: #{cpointnet_forward.7} parent=0 // pred_check
    _
  $region7: #{cpointnet_forward.7} parent=0 // pred_check_branch
    %12 = sbr.rel (0) target = $region9
  $region8: #{cpointnet_forward.7} parent=0 // pred_region
    _
  $region9: #{cpointnet_forward.7} parent=0 // pred_fallthru
    _
  // Predicated region
  $region10: #{cpointnet_forward.7} parent=0 // pred_check
    _
  $region11: #{cpointnet_forward.7} parent=0 // pred_check_branch
    %14 = sbr.rel (0) target = $region13
  $region12: #{cpointnet_forward.7} parent=0 // pred_region
    _
  $region13: #{cpointnet_forward.7} parent=0 // pred_fallthru
    _
  // Predicated region
  $region14: #{cpointnet_forward.7} parent=0 // pred_check
    _
  $region15: #{cpointnet_forward.7} parent=0 // pred_check_branch
    %16 = sbr.rel (0) target = $region17
  $region16: #{cpointnet_forward.7} parent=0 // pred_region
    _
  $region17: #{cpointnet_forward.7} parent=0 // pred_fallthru
    _
  %v17 = vld [vmem:[%s1] sm:$0xff]
  %v18 = vld [vmem:[%s1 + $0x8] sm:$0xff]
  %v19 = vld [vmem:[%s1 + $0x10] sm:$0xff]
  %v20 = vld [vmem:[%s1 + $0x18] sm:$0xff]
  %v21 = vld [vmem:[%s0] sm:$0xff]
  %v22 = vld [vmem:[%s0 + $0x8] sm:$0xff]
  %vm23 = vcmask 130048
  %v25 = vsel %vm23, %v17, 0
  %v28 = vsel %vm23, %v18, 0
  %v31 = vsel %vm23, %v19, 0
  %v34 = vsel %vm23, %v20, 0
  %36 = vmatprep.subr.mxu0 0.0
  %37 = vmatpush1.msra.mxu0 %v21
  %38 = vmatprep.subr.mxu0 0.0
  %39 = vmatpush1.msra.mxu0 %v22
  %40 = vmatprep.subr.mxu0 0.0
  %41 = vmatpush1.msra.mxu0 0.0
  %42 = vmatprep.subr.mxu0 0.0
  %43 = vmatpush1.msra.mxu0 0.0
  %44 = vmatprep.subr.mxu0 0.0
  %45 = vmatpush1.msra.mxu0 0.0
  %46 = vmatprep.subr.mxu0 0.0
  %47 = vmatpush1.msra.mxu0 0.0
  %48 = vmatprep.subr.mxu0 0.0
  %49 = vmatpush1.msra.mxu0 0.0
  %50 = vmatprep.subr.mxu0 0.0
  %51 = vmatpush1.msra.mxu0 0.0
  %52 = vmatprep.subr.mxu0 0.0
  %53 = vmatpush1.msra.mxu0 0.0
  %54 = vmatprep.subr.mxu0 0.0
  %55 = vmatpush1.msra.mxu0 0.0
  %56 = vmatprep.subr.mxu0 0.0
  %57 = vmatpush1.msra.mxu0 0.0
  %58 = vmatprep.subr.mxu0 0.0
  %59 = vmatpush1.msra.mxu0 0.0
  %60 = vmatprep.subr.mxu0 0.0
  %61 = vmatpush1.msra.mxu0 0.0
  %62 = vmatprep.subr.mxu0 0.0
  %63 = vmatpush1.msra.mxu0 0.0
  %64 = vmatprep.subr.mxu0 0.0
  %65 = vmatpush1.msra.mxu0 0.0
  %66 = vmatprep.subr.mxu0 0.0
  %67 = vmatpush1.msra.mxu0 0.0
  %68 = vmatprep.subr.mxu0 0.0
  %69 = vmatpush1.msra.mxu0 0.0
  %70 = vmatprep.subr.mxu0 0.0
  %71 = vmatpush1.msra.mxu0 0.0
  %72 = vmatprep.subr.mxu0 0.0
  %73 = vmatpush1.msra.mxu0 0.0
  %74 = vmatprep.subr.mxu0 0.0
  %75 = vmatpush1.msra.mxu0 0.0
  %76 = vmatprep.subr.mxu0 0.0
  %77 = vmatpush1.msra.mxu0 0.0
  %78 = vmatprep.subr.mxu0 0.0
  %79 = vmatpush1.msra.mxu0 0.0
  %80 = vmatprep.subr.mxu0 0.0
  %81 = vmatpush1.msra.mxu0 0.0
  %82 = vmatprep.subr.mxu0 0.0
  %83 = vmatpush1.msra.mxu0 0.0
  %84 = vmatprep.subr.mxu0 0.0
  %85 = vmatpush1.msra.mxu0 0.0
  %86 = vmatprep.subr.mxu0 0.0
  %87 = vmatpush1.msra.mxu0 0.0
  %88 = vmatprep.subr.mxu0 0.0
  %89 = vmatpush1.msra.mxu0 0.0
  %90 = vmatprep.subr.mxu0 0.0
  %91 = vmatpush1.msra.mxu0 0.0
  %92 = vmatprep.subr.mxu0 0.0
  %93 = vmatpush1.msra.mxu0 0.0
  %94 = vmatprep.subr.mxu0 0.0
  %95 = vmatpush1.msra.mxu0 0.0
  %96 = vmatprep.subr.mxu0 0.0
  %97 = vmatpush1.msra.mxu0 0.0
  %98 = vmatprep.subr.mxu0 0.0
  %99 = vmatpush1.msra.mxu0 0.0
  %100 = vmatprep.mubr.f32.mxu0 0.0
  %101 = vmatmul.mubr.f32.gmra.mrb[0].mxu0 %v25
  %v102 = vpop.f32.mrb[0].mxu0
  %v103 = vadd.f32 0.0, %v102
  %v104 = vpop.f32.mrb[0].mxu0
  %105 = vmatprep.mubr.f32.mxu0 0.0
  %106 = vmatmul.mubr.f32.gmra.mrb[0].mxu0 %v28
  %v107 = vpop.f32.mrb[0].mxu0
  %v108 = vadd.f32 0.0, %v107
  %v109 = vpop.f32.mrb[0].mxu0
  %110 = vmatprep.mubr.f32.mxu0 0.0
  %111 = vmatmul.mubr.f32.gmra.mrb[0].mxu0 %v31
  %v112 = vpop.f32.mrb[0].mxu0
  %v113 = vadd.f32 0.0, %v112
  %v114 = vpop.f32.mrb[0].mxu0
  %115 = vmatprep.mubr.f32.mxu0 0.0
  %116 = vmatmul.mubr.f32.gmra.mrb[0].mxu0 %v34
  %v117 = vpop.f32.mrb[0].mxu0
  %v118 = vadd.f32 0.0, %v117
  %v119 = vpop.f32.mrb[0].mxu0
  %120 = vdwg.mxu0
  %v121 = vld [vmem:[%s2] sm:$0xff]
  %v122 = vld [vmem:[%s2 + $0x8] sm:$0xff]
  %v123 = vld [vmem:[%s2 + $0x10] sm:$0xff]
  %v124 = vld [vmem:[%s2 + $0x18] sm:$0xff]
  %126 = vset.pattern.permute.xlu0 0
  %127 = vperm.xlu0 %126, %v121
  %v128 = vpop.permute.xlu0 %127
  %131 = vset.pattern.permute.xlu0 0
  %132 = vperm.xlu0 %131, %v122
  %v133 = vpop.permute.xlu0 %132
  %136 = vset.pattern.permute.xlu0 0
  %137 = vperm.xlu0 %136, %v123
  %v138 = vpop.permute.xlu0 %137
  %141 = vset.pattern.permute.xlu0 0
  %142 = vperm.xlu0 %141, %v124
  %v143 = vpop.permute.xlu0 %142
  %v145 = vmul.f32 %v103, %v128
  %v146 = vmul.f32 %v108, %v133
  %v147 = vmul.f32 %v113, %v138
  %v148 = vmul.f32 %v118, %v143
  %v149 = vld [vmem:[%s3] sm:$0xff]
  %v150 = vld [vmem:[%s3 + $0x8] sm:$0xff]
  %v151 = vld [vmem:[%s3 + $0x10] sm:$0xff]
  %v152 = vld [vmem:[%s3 + $0x18] sm:$0xff]
  %154 = vset.pattern.permute.xlu0 0
  %155 = vperm.xlu0 %154, %v149
  %v156 = vpop.permute.xlu0 %155
  %159 = vset.pattern.permute.xlu0 0
  %160 = vperm.xlu0 %159, %v150
  %v161 = vpop.permute.xlu0 %160
  %164 = vset.pattern.permute.xlu0 0
  %165 = vperm.xlu0 %164, %v151
  %v166 = vpop.permute.xlu0 %165
  %169 = vset.pattern.permute.xlu0 0
  %170 = vperm.xlu0 %169, %v152
  %v171 = vpop.permute.xlu0 %170
  %v173 = vadd.f32 %v145, %v156
  %v174 = vadd.f32 %v146, %v161
  %v175 = vadd.f32 %v147, %v166
  %v176 = vadd.f32 %v148, %v171
  %v177 = vmax.f32 %v173, 0.0
  %v178 = vmax.f32 %v174, 0.0
  %v179 = vmax.f32 %v175, 0.0
  %v180 = vmax.f32 %v176, 0.0
  %v181 = vlaneseq
  %v182 = vand.u32 %v181, 127
  %s183 = smul.u32 0, 128
  %v184 = vstv %s183
  %v185 = vadd.s32 %v182, %v184
  %vm186 = vcmp.lt.s32.totalorder %v185, 32
  %v187 = vsel %vm186, %v177, 0.0
  %v188 = vsel %vm186, %v178, 0.0
  %v189 = vsel %vm186, %v179, 0.0
  %v190 = vsel %vm186, %v180, 0.0
  %191 = vst [vmem:[%s4] sm:$0xff] %v187
  %192 = vst [vmem:[%s4 + $0x8] sm:$0xff] %v188
  %193 = vst [vmem:[%s4 + $0x10] sm:$0xff] %v189
  %194 = vst [vmem:[%s4 + $0x18] sm:$0xff] %v190
  // Predicated region
  $region18: #{cpointnet_forward.7} parent=0 // pred_check
    _
  $region19: #{cpointnet_forward.7} parent=0 // pred_check_branch
    %196 = sbr.rel (0) target = $region21
  $region20: #{cpointnet_forward.7} parent=0 // pred_region
    _
  $region21: #{cpointnet_forward.7} parent=0 // pred_fallthru
    _
  // Predicated region
  $region22: #{cpointnet_forward.7} parent=0 // pred_check
    _
  $region23: #{cpointnet_forward.7} parent=0 // pred_check_branch
    %198 = sbr.rel (0) target = $region25
  $region24: #{cpointnet_forward.7} parent=0 // pred_region
    _
  $region25: #{cpointnet_forward.7} parent=0 // pred_fallthru
    _

</llo_original>
